<compile_context>
chip_gen: v6e
topology: v6e:2x2x1
jax: 0.10.0
libtpu: 0.0.40
codegen_flags: <defaults>
</compile_context>

<pallas_src>
import jax
import jax.numpy as jnp
from jax.experimental import pallas as pl
from jax.experimental.pallas import tpu as pltpu


# ------------------------------- helpers ----------------------------------- #
def _cdiv(a, b):
    return (a + b - 1) // b


def _round_up(a, b):
    return _cdiv(a, b) * b


def _tpu_tuning():
    """(tm_max, vmem_limit_bytes, min_grid_steps) tuned per chip generation."""
    # Safe-everywhere defaults (match v7x: 64 MiB VMEM, 2 TensorCores/chip).
    tm_max, vmem_limit, min_steps = 512, 48 * 1024 * 1024, 2
    try:
        info = pltpu.get_tpu_info()
        vmem = getattr(info, "vmem_capacity_bytes", None)
        if vmem is not None and vmem >= 100 * 1024 * 1024:
            # v5e / v6e: 128 MiB VMEM, single TensorCore per chip -> bigger tiles.
            tm_max, vmem_limit, min_steps = 1024, 96 * 1024 * 1024, 1
    except Exception:
        pass
    return tm_max, vmem_limit, min_steps


# ----------------------------- Pallas kernel -------------------------------- #
def _head_kernel(x_ref, w1_ref, b1_ref, w2_ref, b2_ref, out_ref):
    """Fused LayerNorm + mid_linear (Linear+ReLU) + classifier for one row tile."""
    # LayerNorm in f32 (gamma/beta already folded into W1/b1 wrapper-side).
    x = x_ref[...].astype(jnp.float32)                       # (tm, H)
    mu = jnp.mean(x, axis=-1, keepdims=True)
    xc = x - mu
    var = jnp.mean(xc * xc, axis=-1, keepdims=True)
    xn = xc * jax.lax.rsqrt(var + 1e-12)

    # mid_linear: bf16 MXU matmul, f32 accumulate, f32 bias + ReLU.
    h = jnp.dot(xn.astype(jnp.bfloat16), w1_ref[...],
                preferred_element_type=jnp.float32)          # (tm, mid)
    h = jnp.maximum(h + b1_ref[...], 0.0)
    # Dropout(p) in eval mode is identity.

    # classifier: bf16 MXU matmul into a lane-dense (128-wide) padded output.
    e = jnp.dot(h.astype(jnp.bfloat16), w2_ref[...],
                preferred_element_type=jnp.float32)          # (tm, n_pad)
    out_ref[...] = (e + b2_ref[...]).astype(out_ref.dtype)   # bf16 writeback


# ------------------------------ head wrapper -------------------------------- #
def _prepare_head_params(params, n_pad):
    """Fold LN gamma/beta into W1/b1, cast matmul weights to bf16, pad classifier."""
    ln_w, ln_b = params["ln_w"], params["ln_b"]
    w1, b1 = params["w1"], params["b1"]
    w2, b2 = params["w2"], params["b2"]
    mid = w1.shape[1]
    num_tags = w2.shape[1]

    w1f = (ln_w[:, None] * w1).astype(jnp.bfloat16)                       # (H, mid)
    b1f = (ln_b @ w1 + b1).reshape(1, mid).astype(jnp.float32)            # (1, mid)
    w2p = jnp.zeros((mid, n_pad), jnp.bfloat16).at[:, :num_tags].set(
        w2.astype(jnp.bfloat16))                                          # (mid, n_pad)
    b2p = jnp.zeros((1, n_pad), jnp.float32).at[:, :num_tags].set(
        b2.astype(jnp.float32))                                           # (1, n_pad)
    return w1f, b1f, w2p, b2p


def csidn_head(x_bf16, w1f, b1f, w2p, b2p, *, num_tags):
    """x_bf16: [M, H] bf16 pre-LayerNorm hidden states -> [M, num_tags] f32."""
    M, H = x_bf16.shape
    mid = w1f.shape[1]
    n_pad = w2p.shape[1]

    tm_max, vmem_limit, min_steps = _tpu_tuning()
    # Even split of rows over the grid (avoids ~2x waste for unlucky M); multiple
    # of 16 for bf16 sublane packing; never bigger than the (rounded) row count.
    n_steps = max(_cdiv(M, tm_max), min_steps)
    tm = min(_round_up(_cdiv(M, n_steps), 16), _round_up(M, 16))
    grid = (_cdiv(M, tm),)   # last block may overhang M; OOB rows are discarded

    def build_in_specs(single_buffer_weights):
        wmode = dict(pipeline_mode=pl.Buffered(1)) if single_buffer_weights else {}
        return [
            pl.BlockSpec((tm, H), lambda i: (i, 0)),                 # X row tile (bf16)
            pl.BlockSpec((H, mid), lambda i: (0, 0), **wmode),       # W1 folded (bf16)
            pl.BlockSpec((1, mid), lambda i: (0, 0), **wmode),       # b1 folded (f32)
            pl.BlockSpec((mid, n_pad), lambda i: (0, 0), **wmode),   # W2 padded (bf16)
            pl.BlockSpec((1, n_pad), lambda i: (0, 0), **wmode),     # b2 padded (f32)
        ]

    def call(single_buffer_weights):
        return pl.pallas_call(
            _head_kernel,
            out_shape=jax.ShapeDtypeStruct((M, n_pad), jnp.bfloat16),
            grid_spec=pltpu.PrefetchScalarGridSpec(
                num_scalar_prefetch=0,
                grid=grid,
                in_specs=build_in_specs(single_buffer_weights),
                out_specs=pl.BlockSpec((tm, n_pad), lambda i: (i, 0)),
            ),
            compiler_params=pltpu.CompilerParams(
                dimension_semantics=("parallel",),
                vmem_limit_bytes=vmem_limit),
        )(x_bf16, w1f, b1f, w2p, b2p)

    try:
        out = call(True)            # single-buffered grid-invariant weights
    except Exception:
        out = call(False)           # fallback: default double-buffered weights

    return out[:M, :num_tags].astype(jnp.float32)


# ----------------------- BERT-embedding stand-in glue ----------------------- #
def bert_embedding_sum(token_ids, token_type_ids, params):
    """Word + position + token-type embedding sum, emitted directly as bf16.

    Its LayerNorm is fused into the head kernel, so this is the only [B,S,H]
    tensor that crosses HBM, and it crosses it once, in bf16.
    """
    we = params["word_emb"][token_ids]                        # (B, S, H)
    pe = params["pos_emb"][jnp.arange(token_ids.shape[1])]    # (S, H)
    te = params["type_emb"][token_type_ids]                   # (B, S, H)
    return (we + pe[None, :, :] + te).astype(jnp.bfloat16)


def csidn_forward_cal_emissions(token_ids, attention_masks, token_type_ids, params):
    del attention_masks  # only used for decode-mode length trimming
    h_pre = bert_embedding_sum(token_ids, token_type_ids, params)  # (B, S, H) bf16
    B, S, H = h_pre.shape
    num_tags = params["w2"].shape[1]
    n_pad = max(128, _round_up(num_tags, 128))
    w1f, b1f, w2p, b2p = _prepare_head_params(params, n_pad)
    emissions = csidn_head(h_pre.reshape(B * S, H), w1f, b1f, w2p, b2p,
                           num_tags=num_tags)
    return emissions.reshape(B, S, num_tags)


# -------------------------------- param setup -------------------------------- #
def init_params(key, *, vocab=64, seq=8, hidden=32, mid=128, num_tags=8):
    ks = jax.random.split(key, 6)
    return {
        "word_emb": 0.02 * jax.random.normal(ks[0], (vocab, hidden), jnp.float32),
        "pos_emb": 0.02 * jax.random.normal(ks[1], (seq, hidden), jnp.float32),
        "type_emb": 0.02 * jax.random.normal(ks[2], (2, hidden), jnp.float32),
        "ln_w": jnp.ones((hidden,), jnp.float32),
        "ln_b": jnp.zeros((hidden,), jnp.float32),
        # mid_linear: Linear(hidden, mid); _init_weights zeros the bias.
        "w1": (1.0 / jnp.sqrt(hidden)) *
              jax.random.normal(ks[3], (hidden, mid), jnp.float32),
        "b1": jnp.zeros((mid,), jnp.float32),
        # classifier: Linear(mid, num_tags); bias zeroed.
        "w2": (1.0 / jnp.sqrt(mid)) *
              jax.random.normal(ks[4], (mid, num_tags), jnp.float32),
        "b2": jnp.zeros((num_tags,), jnp.float32),
    }


# ----------------------------- plain-JAX reference --------------------------- #
def reference_emissions(token_ids, token_type_ids, params):
    """Same precision pipeline as the kernel path, in plain JAX."""
    h_pre = bert_embedding_sum(token_ids, token_type_ids, params)  # bf16
    B, S, H = h_pre.shape
    num_tags = params["w2"].shape[1]
    n_pad = max(128, _round_up(num_tags, 128))
    w1f, b1f, w2p, b2p = _prepare_head_params(params, n_pad)

    x = h_pre.reshape(B * S, H).astype(jnp.float32)
    mu = x.mean(-1, keepdims=True)
    xc = x - mu
    var = (xc * xc).mean(-1, keepdims=True)
    xn = xc * jax.lax.rsqrt(var + 1e-12)
    h = jnp.dot(xn.astype(jnp.bfloat16), w1f,
                preferred_element_type=jnp.float32) + b1f
    h = jnp.maximum(h, 0.0)
    e = jnp.dot(h.astype(jnp.bfloat16), w2p,
                preferred_element_type=jnp.float32) + b2p
    e = e.astype(jnp.bfloat16).astype(jnp.float32)
    return e[:, :num_tags].reshape(B, S, num_tags)


# ---------------------------------- main ------------------------------------- #
if __name__ == "__main__":
    B, S, H, MID, NUM_TAGS, VOCAB = 2, 8, 32, 128, 8, 64

    key = jax.random.PRNGKey(0)
    pkey, tkey = jax.random.split(key)
    params = init_params(pkey, vocab=VOCAB, seq=S, hidden=H,
                         mid=MID, num_tags=NUM_TAGS)

    token_ids = jax.random.randint(tkey, (B, S), 0, VOCAB, dtype=jnp.int32)
    attention_masks = jnp.ones((B, S), jnp.int32)
    token_type_ids = jnp.zeros((B, S), jnp.int32)

    emissions = csidn_forward_cal_emissions(
        token_ids, attention_masks, token_type_ids, params)
    emissions = jax.block_until_ready(emissions)

    ref = reference_emissions(token_ids, token_type_ids, params)
    assert emissions.shape == (B, S, NUM_TAGS)
    max_err = float(jnp.max(jnp.abs(emissions - ref)))
    assert jnp.allclose(emissions, ref, atol=2e-2, rtol=2e-2), max_err

    print("KERNEL_OK")
</pallas_src>

<mosaic_0001>
module attributes {stable_mosaic.version = 11 : i64} {
  func.func @_head_kernel(%arg0: i32, %arg1: memref<16x32xbf16, #tpu.memory_space<vmem>>, %arg2: memref<32x128xbf16, #tpu.memory_space<vmem>>, %arg3: memref<1x128xf32, #tpu.memory_space<vmem>>, %arg4: memref<128x128xbf16, #tpu.memory_space<vmem>>, %arg5: memref<1x128xf32, #tpu.memory_space<vmem>>, %arg6: memref<16x128xbf16, #tpu.memory_space<vmem>>) attributes {dimension_semantics = [#tpu.dimension_semantics<parallel>], iteration_bounds = array<i64: 1>, scalar_prefetch = 0 : i64, scratch_operands = 0 : i64, tpu.core_type = #tpu.core_type<tc>, window_params = [{transform_indices = @transform_0, window_bounds = array<i64: 16, 32>}, {pipeline_mode = #tpu.pipeline_mode<synchronous>, transform_indices = @transform_1, window_bounds = array<i64: 32, 128>}, {pipeline_mode = #tpu.pipeline_mode<synchronous>, transform_indices = @transform_2, window_bounds = array<i64: 1, 128>}, {pipeline_mode = #tpu.pipeline_mode<synchronous>, transform_indices = @transform_3, window_bounds = array<i64: 128, 128>}, {pipeline_mode = #tpu.pipeline_mode<synchronous>, transform_indices = @transform_4, window_bounds = array<i64: 1, 128>}, {transform_indices = @transform_5, window_bounds = array<i64: 16, 128>}]} {
    %c0 = arith.constant 0 : index
    %c0_0 = arith.constant 0 : index
    %0 = vector.load %arg1[%c0, %c0_0] : memref<16x32xbf16, #tpu.memory_space<vmem>>, vector<16x32xbf16>
    %1 = arith.extf %0 : vector<16x32xbf16> to vector<16x32xf32>
    %cst = arith.constant dense<0.000000e+00> : vector<16xf32>
    %2 = vector.multi_reduction <add>, %1, %cst [1] : vector<16x32xf32> to vector<16xf32>
    %3 = vector.shape_cast %2 : vector<16xf32> to vector<16x1xf32>
    %cst_1 = arith.constant 3.200000e+01 : f32
    %4 = vector.broadcast %cst_1 : f32 to vector<16x1xf32>
    %5 = arith.divf %3, %4 : vector<16x1xf32>
    %6 = vector.broadcast %5 : vector<16x1xf32> to vector<16x32xf32>
    %7 = arith.subf %1, %6 : vector<16x32xf32>
    %8 = arith.mulf %7, %7 : vector<16x32xf32>
    %cst_2 = arith.constant dense<0.000000e+00> : vector<16xf32>
    %9 = vector.multi_reduction <add>, %8, %cst_2 [1] : vector<16x32xf32> to vector<16xf32>
    %10 = vector.shape_cast %9 : vector<16xf32> to vector<16x1xf32>
    %cst_3 = arith.constant 3.200000e+01 : f32
    %11 = vector.broadcast %cst_3 : f32 to vector<16x1xf32>
    %12 = arith.divf %10, %11 : vector<16x1xf32>
    %cst_4 = arith.constant 9.99999996E-13 : f32
    %13 = vector.broadcast %cst_4 : f32 to vector<16x1xf32>
    %14 = arith.addf %12, %13 : vector<16x1xf32>
    %15 = math.rsqrt %14 : vector<16x1xf32>
    %16 = vector.broadcast %15 : vector<16x1xf32> to vector<16x32xf32>
    %17 = arith.mulf %7, %16 : vector<16x32xf32>
    %18 = arith.truncf %17 : vector<16x32xf32> to vector<16x32xbf16>
    %c0_5 = arith.constant 0 : index
    %c0_6 = arith.constant 0 : index
    %19 = vector.load %arg2[%c0_5, %c0_6] : memref<32x128xbf16, #tpu.memory_space<vmem>>, vector<32x128xbf16>
    %cst_7 = arith.constant dense<0.000000e+00> : vector<16x128xf32>
    %20 = tpu.matmul %18, %19, %cst_7 {dimension_numbers = #tpu.dot_dimension_numbers<[1], [0], [0], [1], [0, 0, 1, 1], [], []>} : vector<16x32xbf16>, vector<32x128xbf16>, vector<16x128xf32> -> vector<16x128xf32>
    %c0_8 = arith.constant 0 : index
    %c0_9 = arith.constant 0 : index
    %21 = vector.load %arg3[%c0_8, %c0_9] : memref<1x128xf32, #tpu.memory_space<vmem>>, vector<1x128xf32>
    %22 = vector.broadcast %21 : vector<1x128xf32> to vector<16x128xf32>
    %23 = arith.addf %20, %22 : vector<16x128xf32>
    %cst_10 = arith.constant 0.000000e+00 : f32
    %24 = vector.broadcast %cst_10 : f32 to vector<16x128xf32>
    %25 = arith.maximumf %23, %24 : vector<16x128xf32>
    %26 = arith.truncf %25 : vector<16x128xf32> to vector<16x128xbf16>
    %c0_11 = arith.constant 0 : index
    %c0_12 = arith.constant 0 : index
    %27 = vector.load %arg4[%c0_11, %c0_12] : memref<128x128xbf16, #tpu.memory_space<vmem>>, vector<128x128xbf16>
    %cst_13 = arith.constant dense<0.000000e+00> : vector<16x128xf32>
    %28 = tpu.matmul %26, %27, %cst_13 {dimension_numbers = #tpu.dot_dimension_numbers<[1], [0], [0], [1], [0, 0, 1, 1], [], []>} : vector<16x128xbf16>, vector<128x128xbf16>, vector<16x128xf32> -> vector<16x128xf32>
    %c0_14 = arith.constant 0 : index
    %c0_15 = arith.constant 0 : index
    %29 = vector.load %arg5[%c0_14, %c0_15] : memref<1x128xf32, #tpu.memory_space<vmem>>, vector<1x128xf32>
    %30 = vector.broadcast %29 : vector<1x128xf32> to vector<16x128xf32>
    %31 = arith.addf %28, %30 : vector<16x128xf32>
    %32 = arith.truncf %31 : vector<16x128xf32> to vector<16x128xbf16>
    %c0_16 = arith.constant 0 : index
    %c0_17 = arith.constant 0 : index
    %33 = vector.load %arg6[%c0_16, %c0_17] : memref<16x128xbf16, #tpu.memory_space<vmem>>, vector<16x128xbf16>
    tpu.vector_store %arg6[%c0_16, %c0_17], %32 {strides = array<i32>} : memref<16x128xbf16, #tpu.memory_space<vmem>>, vector<16x128xbf16>,
    return
  }
  func.func @transform_0(%arg0: i32) -> (i32, i32) {
    %c0_i32 = arith.constant 0 : i32
    %c0_i32_0 = arith.constant 0 : i32
    return %arg0, %c0_i32 : i32, i32
  }
  func.func @transform_1(%arg0: i32) -> (i32, i32) {
    %c0_i32 = arith.constant 0 : i32
    %c0_i32_0 = arith.constant 0 : i32
    %c0_i32_1 = arith.constant 0 : i32
    return %c0_i32, %c0_i32_0 : i32, i32
  }
  func.func @transform_2(%arg0: i32) -> (i32, i32) {
    %c0_i32 = arith.constant 0 : i32
    %c0_i32_0 = arith.constant 0 : i32
    %c0_i32_1 = arith.constant 0 : i32
    return %c0_i32, %c0_i32_0 : i32, i32
  }
  func.func @transform_3(%arg0: i32) -> (i32, i32) {
    %c0_i32 = arith.constant 0 : i32
    %c0_i32_0 = arith.constant 0 : i32
    %c0_i32_1 = arith.constant 0 : i32
    return %c0_i32, %c0_i32_0 : i32, i32
  }
  func.func @transform_4(%arg0: i32) -> (i32, i32) {
    %c0_i32 = arith.constant 0 : i32
    %c0_i32_0 = arith.constant 0 : i32
    %c0_i32_1 = arith.constant 0 : i32
    return %c0_i32, %c0_i32_0 : i32, i32
  }
  func.func @transform_5(%arg0: i32) -> (i32, i32) {
    %c0_i32 = arith.constant 0 : i32
    %c0_i32_0 = arith.constant 0 : i32
    return %arg0, %c0_i32 : i32, i32
  }
}

module attributes {stable_mosaic.version = 11 : i64} {
  func.func @_head_kernel(%arg0: i32, %arg1: memref<16x32xbf16, #tpu.memory_space<vmem>>, %arg2: memref<32x128xbf16, #tpu.memory_space<vmem>>, %arg3: memref<1x128xf32, #tpu.memory_space<vmem>>, %arg4: memref<128x128xbf16, #tpu.memory_space<vmem>>, %arg5: memref<1x128xf32, #tpu.memory_space<vmem>>, %arg6: memref<16x128xbf16, #tpu.memory_space<vmem>>) attributes {dimension_semantics = [#tpu.dimension_semantics<parallel>], iteration_bounds = array<i64: 1>, scalar_prefetch = 0 : i64, scratch_operands = 0 : i64, tpu.core_type = #tpu.core_type<tc>, window_params = [{transform_indices = @transform_0, window_bounds = array<i64: 16, 32>}, {pipeline_mode = #tpu.pipeline_mode<synchronous>, transform_indices = @transform_1, window_bounds = array<i64: 32, 128>}, {pipeline_mode = #tpu.pipeline_mode<synchronous>, transform_indices = @transform_2, window_bounds = array<i64: 1, 128>}, {pipeline_mode = #tpu.pipeline_mode<synchronous>, transform_indices = @transform_3, window_bounds = array<i64: 128, 128>}, {pipeline_mode = #tpu.pipeline_mode<synchronous>, transform_indices = @transform_4, window_bounds = array<i64: 1, 128>}, {transform_indices = @transform_5, window_bounds = array<i64: 16, 128>}]} {
    %c0 = arith.constant 0 : index
    %c0_0 = arith.constant 0 : index
    %0 = vector.load %arg1[%c0, %c0_0] : memref<16x32xbf16, #tpu.memory_space<vmem>>, vector<16x32xbf16>
    %1 = arith.extf %0 : vector<16x32xbf16> to vector<16x32xf32>
    %cst = arith.constant dense<0.000000e+00> : vector<16xf32>
    %2 = vector.multi_reduction <add>, %1, %cst [1] : vector<16x32xf32> to vector<16xf32>
    %3 = vector.shape_cast %2 : vector<16xf32> to vector<16x1xf32>
    %cst_1 = arith.constant 3.200000e+01 : f32
    %4 = vector.broadcast %cst_1 : f32 to vector<16x1xf32>
    %5 = arith.divf %3, %4 : vector<16x1xf32>
    %6 = vector.broadcast %5 : vector<16x1xf32> to vector<16x32xf32>
    %7 = arith.subf %1, %6 : vector<16x32xf32>
    %8 = arith.mulf %7, %7 : vector<16x32xf32>
    %cst_2 = arith.constant dense<0.000000e+00> : vector<16xf32>
    %9 = vector.multi_reduction <add>, %8, %cst_2 [1] : vector<16x32xf32> to vector<16xf32>
    %10 = vector.shape_cast %9 : vector<16xf32> to vector<16x1xf32>
    %cst_3 = arith.constant 3.200000e+01 : f32
    %11 = vector.broadcast %cst_3 : f32 to vector<16x1xf32>
    %12 = arith.divf %10, %11 : vector<16x1xf32>
    %cst_4 = arith.constant 9.99999996E-13 : f32
    %13 = vector.broadcast %cst_4 : f32 to vector<16x1xf32>
    %14 = arith.addf %12, %13 : vector<16x1xf32>
    %15 = math.rsqrt %14 : vector<16x1xf32>
    %16 = vector.broadcast %15 : vector<16x1xf32> to vector<16x32xf32>
    %17 = arith.mulf %7, %16 : vector<16x32xf32>
    %18 = arith.truncf %17 : vector<16x32xf32> to vector<16x32xbf16>
    %c0_5 = arith.constant 0 : index
    %c0_6 = arith.constant 0 : index
    %19 = vector.load %arg2[%c0_5, %c0_6] : memref<32x128xbf16, #tpu.memory_space<vmem>>, vector<32x128xbf16>
    %cst_7 = arith.constant dense<0.000000e+00> : vector<16x128xf32>
    %20 = tpu.matmul %18, %19, %cst_7 {dimension_numbers = #tpu.dot_dimension_numbers<[1], [0], [0], [1], [0, 0, 1, 1], [], []>} : vector<16x32xbf16>, vector<32x128xbf16>, vector<16x128xf32> -> vector<16x128xf32>
    %c0_8 = arith.constant 0 : index
    %c0_9 = arith.constant 0 : index
    %21 = vector.load %arg3[%c0_8, %c0_9] : memref<1x128xf32, #tpu.memory_space<vmem>>, vector<1x128xf32>
    %22 = vector.broadcast %21 : vector<1x128xf32> to vector<16x128xf32>
    %23 = arith.addf %20, %22 : vector<16x128xf32>
    %cst_10 = arith.constant 0.000000e+00 : f32
    %24 = vector.broadcast %cst_10 : f32 to vector<16x128xf32>
    %25 = arith.maximumf %23, %24 : vector<16x128xf32>
    %26 = arith.truncf %25 : vector<16x128xf32> to vector<16x128xbf16>
    %c0_11 = arith.constant 0 : index
    %c0_12 = arith.constant 0 : index
    %27 = vector.load %arg4[%c0_11, %c0_12] : memref<128x128xbf16, #tpu.memory_space<vmem>>, vector<128x128xbf16>
    %cst_13 = arith.constant dense<0.000000e+00> : vector<16x128xf32>
    %28 = tpu.matmul %26, %27, %cst_13 {dimension_numbers = #tpu.dot_dimension_numbers<[1], [0], [0], [1], [0, 0, 1, 1], [], []>} : vector<16x128xbf16>, vector<128x128xbf16>, vector<16x128xf32> -> vector<16x128xf32>
    %c0_14 = arith.constant 0 : index
    %c0_15 = arith.constant 0 : index
    %29 = vector.load %arg5[%c0_14, %c0_15] : memref<1x128xf32, #tpu.memory_space<vmem>>, vector<1x128xf32>
    %30 = vector.broadcast %29 : vector<1x128xf32> to vector<16x128xf32>
    %31 = arith.addf %28, %30 : vector<16x128xf32>
    %32 = arith.truncf %31 : vector<16x128xf32> to vector<16x128xbf16>
    %c0_16 = arith.constant 0 : index
    %c0_17 = arith.constant 0 : index
    %33 = vector.load %arg6[%c0_16, %c0_17] : memref<16x128xbf16, #tpu.memory_space<vmem>>, vector<16x128xbf16>
    tpu.vector_store %arg6[%c0_16, %c0_17], %32 {strides = array<i32>} : memref<16x128xbf16, #tpu.memory_space<vmem>>, vector<16x128xbf16>,
    return
  }
  func.func @transform_0(%arg0: i32) -> (i32, i32) {
    %c0_i32 = arith.constant 0 : i32
    %c0_i32_0 = arith.constant 0 : i32
    return %arg0, %c0_i32 : i32, i32
  }
  func.func @transform_1(%arg0: i32) -> (i32, i32) {
    %c0_i32 = arith.constant 0 : i32
    %c0_i32_0 = arith.constant 0 : i32
    %c0_i32_1 = arith.constant 0 : i32
    return %c0_i32, %c0_i32_0 : i32, i32
  }
  func.func @transform_2(%arg0: i32) -> (i32, i32) {
    %c0_i32 = arith.constant 0 : i32
    %c0_i32_0 = arith.constant 0 : i32
    %c0_i32_1 = arith.constant 0 : i32
    return %c0_i32, %c0_i32_0 : i32, i32
  }
  func.func @transform_3(%arg0: i32) -> (i32, i32) {
    %c0_i32 = arith.constant 0 : i32
    %c0_i32_0 = arith.constant 0 : i32
    %c0_i32_1 = arith.constant 0 : i32
    return %c0_i32, %c0_i32_0 : i32, i32
  }
  func.func @transform_4(%arg0: i32) -> (i32, i32) {
    %c0_i32 = arith.constant 0 : i32
    %c0_i32_0 = arith.constant 0 : i32
    %c0_i32_1 = arith.constant 0 : i32
    return %c0_i32, %c0_i32_0 : i32, i32
  }
  func.func @transform_5(%arg0: i32) -> (i32, i32) {
    %c0_i32 = arith.constant 0 : i32
    %c0_i32_0 = arith.constant 0 : i32
    return %arg0, %c0_i32 : i32, i32
  }
}

</mosaic_0001>

<llo_original>
// kernel: tpu_custom_call.1
$region0: #{tpu_custom_call.1}
  #allocation0 [shape = 'u32[]', space=smem, size = 0x4, offset = 0x4, fixed_abs, tag = 'smem constant byte address 0x4 - core index']
  #allocation1 [shape = 'u32[144,128]{1,0:T(1,128)}', space=vmem, size = 0x12000, scoped, tag = 'internal scratch']
  %s0 = inlined_call_operand.hbm [shape: bf16[16,32], index: 0, kind: input, shape index: {}]
  %s1 = inlined_call_operand.hbm [shape: bf16[32,128], index: 1, kind: input, shape index: {}]
  %s2 = inlined_call_operand.vmem [shape: f32[1,128], index: 2, kind: input, shape index: {}]
  %s3 = inlined_call_operand.hbm [shape: bf16[128,128], index: 3, kind: input, shape index: {}]
  %s4 = inlined_call_operand.vmem [shape: f32[1,128], index: 4, kind: input, shape index: {}]
  %s5 = inlined_call_operand.hbm [shape: bf16[16,128], index: 5, kind: output, shape index: {}]
  %s6 = sld [smem:[#allocation0]]
  $region42: #{tpu_custom_call.1} parent=0
    _
  %s8 = ssub.s32 1, %s6
  %s9 = scalar_select 0, %s8, %s6
  $region1: #{tpu_custom_call.1} parent=0
    #allocation2 [shape = 'u8[4096]{0}', space=vmem, size = 0x1000, scoped, tag = 'input window, operand 0, single buffered']
    #allocation3 [shape = 's32[1]{0}', space=sflag, size = 0x4, scoped, tag = 'scoped memory for tpu_custom_call.1']
    #allocation4 [shape = 's32[1]{0}', space=sflag, size = 0x4, scoped, tag = 'scoped memory for tpu_custom_call.1']
    #allocation5 [shape = 'u8[8192]{0}', space=vmem, size = 0x2000, scoped, tag = 'input window, operand 1, single buffered']
    #allocation6 [shape = 's32[1]{0}', space=sflag, size = 0x4, scoped, tag = 'scoped memory for tpu_custom_call.1']
    #allocation7 [shape = 'u8[32768]{0}', space=vmem, size = 0x8000, scoped, tag = 'input window, operand 3, single buffered']
    #allocation8 [shape = 'u8[4096]{0}', space=vmem, size = 0x1000, scoped, tag = 'output window, operand 0, single buffered']
    %10 = vsyncpa [#allocation3], 0
    %11 = vsyncpa [#allocation6], 0
    %12 = vsyncpa [#allocation4], 0
    // Predicated region
    $region2: #{tpu_custom_call.1} parent=1 // pred_check
      _
    $region3: #{tpu_custom_call.1} parent=1 // pred_check_branch
      %14 = sbr.rel (0) target = $region5
    $region4: #{tpu_custom_call.1} parent=1 // pred_region
      %s16 = ssub.s32 128, 128
      %17 = vsyncadd [#allocation3], %s16
      %s18 = sshll.u32 [#allocation2], 4
      %s19 = int_to_ptr.vmem [resolvable:$true] %s18
      %24 = dma.hbm_to_vmem [thread:$0]  %s0, 128, %s19, [#allocation3], 64, 64, 4
    $region5: #{tpu_custom_call.1} parent=1 // pred_fallthru
      _
    // Predicated region
    $region6: #{tpu_custom_call.1} parent=1 // pred_check
      _
    $region7: #{tpu_custom_call.1} parent=1 // pred_check_branch
      %26 = sbr.rel (0) target = $region9
    $region8: #{tpu_custom_call.1} parent=1 // pred_region
      %s28 = ssub.s32 256, 256
      %29 = vsyncadd [#allocation6], %s28
      %s30 = sshll.u32 [#allocation5], 4
      %s31 = int_to_ptr.vmem [resolvable:$true] %s30
      %36 = dma.hbm_to_vmem [thread:$0]  %s1, 256, %s31, [#allocation6], 64, 64, 4
    $region9: #{tpu_custom_call.1} parent=1 // pred_fallthru
      _
    // Predicated region
    $region10: #{tpu_custom_call.1} parent=1 // pred_check
      _
    $region11: #{tpu_custom_call.1} parent=1 // pred_check_branch
      %38 = sbr.rel (0) target = $region13
    $region12: #{tpu_custom_call.1} parent=1 // pred_region
      _
    $region13: #{tpu_custom_call.1} parent=1 // pred_fallthru
      _
    // Predicated region
    $region14: #{tpu_custom_call.1} parent=1 // pred_check
      _
    $region15: #{tpu_custom_call.1} parent=1 // pred_check_branch
      %40 = sbr.rel (0) target = $region17
    $region16: #{tpu_custom_call.1} parent=1 // pred_region
      %s42 = ssub.s32 1024, 1024
      %43 = vsyncadd [#allocation6], %s42
      %s44 = sshll.u32 [#allocation7], 4
      %s45 = int_to_ptr.vmem [resolvable:$true] %s44
      %50 = dma.hbm_to_vmem [thread:$0]  %s3, 1024, %s45, [#allocation6], 64, 64, 4
    $region17: #{tpu_custom_call.1} parent=1 // pred_fallthru
      _
    // Predicated region
    $region18: #{tpu_custom_call.1} parent=1 // pred_check
      _
    $region19: #{tpu_custom_call.1} parent=1 // pred_check_branch
      %52 = sbr.rel (0) target = $region21
    $region20: #{tpu_custom_call.1} parent=1 // pred_region
      _
    $region21: #{tpu_custom_call.1} parent=1 // pred_fallthru
      _
    // Predicated region
    $region22: #{tpu_custom_call.1} parent=1 // pred_check
      _
    $region23: #{tpu_custom_call.1} parent=1 // pred_check_branch
      %54 = sbr.rel (0) target = $region25
    $region24: #{tpu_custom_call.1} parent=1 // pred_region
      %55 = dma.done [#allocation3], 128
    $region25: #{tpu_custom_call.1} parent=1 // pred_fallthru
      _
    // Predicated region
    $region26: #{tpu_custom_call.1} parent=1 // pred_check
      _
    $region27: #{tpu_custom_call.1} parent=1 // pred_check_branch
      %57 = sbr.rel (0) target = $region29
    $region28: #{tpu_custom_call.1} parent=1 // pred_region
      %58 = dma.done [#allocation6], 256
    $region29: #{tpu_custom_call.1} parent=1 // pred_fallthru
      _
    // Predicated region
    $region30: #{tpu_custom_call.1} parent=1 // pred_check
      _
    $region31: #{tpu_custom_call.1} parent=1 // pred_check_branch
      %60 = sbr.rel (0) target = $region33
    $region32: #{tpu_custom_call.1} parent=1 // pred_region
      %61 = dma.done [#allocation6], 1024
    $region33: #{tpu_custom_call.1} parent=1 // pred_fallthru
      _
    %v63 = vld [vmem:[#allocation2] sm:$0xf]
    %v64 = vld [vmem:[#allocation2 + $0x4] sm:$0xf]
    %v65 = vunpack.c.l.bf16 %v63
    %v66 = vunpack.c.l.bf16 %v64
    %vm67 = vcmask 261120
    %v68 = vsel %vm67, %v65, 0.0
    %69 = vadd.xlane.f32.xlu0 %v68
    %v70 = vpop.xlane.xlu0 %69
    %v71 = vsel %vm67, %v66, 0.0
    %72 = vadd.xlane.f32.xlu0 %v71
    %v73 = vpop.xlane.xlu0 %72
    %v74 = vrcp.pop 32.0
    %v75 = vmul.f32 %v70, %v74
    %v76 = vmul.f32 %v73, %v74
    %v77 = vsub.f32 %v65, %v75
    %v78 = vsub.f32 %v66, %v76
    %v79 = vmul.f32 %v77, %v77
    %v80 = vmul.f32 %v78, %v78
    %v81 = vsel %vm67, %v79, 0.0
    %82 = vadd.xlane.f32.xlu0 %v81
    %v83 = vpop.xlane.xlu0 %82
    %v84 = vsel %vm67, %v80, 0.0
    %85 = vadd.xlane.f32.xlu0 %v84
    %v86 = vpop.xlane.xlu0 %85
    %v87 = vmul.f32 %v83, %v74
    %v88 = vmul.f32 %v86, %v74
    %v89 = vadd.f32 %v87, 1e-12
    %v90 = vadd.f32 %v88, 1e-12
    %v91 = vrsqrt.pop %v89
    %v92 = vrsqrt.pop %v90
    %v93 = vmul.f32 %v77, %v91
    %v94 = vmul.f32 %v78, %v92
    %v95 = vpack.c.bf16 %v94, %v93
    %v96 = vld [vmem:[#allocation5] sm:$0xf]
    %v97 = vld [vmem:[#allocation5 + $0x4] sm:$0xf]
    %v98 = vld [vmem:[#allocation5 + $0x8] sm:$0xf]
    %v99 = vld [vmem:[#allocation5 + $0xc] sm:$0xf]
    %v100 = vld [vmem:[%s2] sm:$0x1]
    %v102 = vlaneseq
    %v103 = vshrl.u32 %v102, 7
    %v104 = vsub.s32 0, %v103
    %v105 = vrot.slane %v100, %v104
    %v111 = vunpack.c.l.b16 %v96
    %v112 = vunpack.c.l.b16 %v97
    %v113 = vunpack.c.l.b16 %v98
    %v114 = vunpack.c.l.b16 %v99
    %v115 = vpack.c.b16 %v112, %v111
    %v116 = vpack.c.b16 %v114, %v113
    %v120 = vsel %vm67, %v95, 0
    %122 = vmatprep.subr.bf16.mxu0 0
    %123 = vmatpush1.bf16.msra.mxu0 0
    %124 = vmatprep.subr.bf16.mxu0 0
    %125 = vmatpush1.bf16.msra.mxu0 0
    %126 = vmatprep.subr.bf16.mxu0 0
    %127 = vmatpush1.bf16.msra.mxu0 0
    %128 = vmatprep.subr.bf16.mxu0 0
    %129 = vmatpush1.bf16.msra.mxu0 0
    %130 = vmatprep.subr.bf16.mxu0 0
    %131 = vmatpush1.bf16.msra.mxu0 0
    %132 = vmatprep.subr.bf16.mxu0 0
    %133 = vmatpush1.bf16.msra.mxu0 0
    %134 = vmatprep.subr.bf16.mxu0 0
    %135 = vmatpush1.bf16.msra.mxu0 %v116
    %136 = vmatprep.subr.bf16.mxu0 0
    %137 = vmatpush1.bf16.msra.mxu0 %v115
    %138 = vmatprep.subr.bf16.mxu0 0
    %139 = vmatpush2.bf16.msra.mxu0 0
    %140 = vmatprep.subr.bf16.mxu0 0
    %141 = vmatpush2.bf16.msra.mxu0 0
    %142 = vmatprep.subr.bf16.mxu0 0
    %143 = vmatpush2.bf16.msra.mxu0 0
    %144 = vmatprep.subr.bf16.mxu0 0
    %145 = vmatpush2.bf16.msra.mxu0 0
    %146 = vmatprep.subr.bf16.mxu0 0
    %147 = vmatpush2.bf16.msra.mxu0 0
    %148 = vmatprep.subr.bf16.mxu0 0
    %149 = vmatpush2.bf16.msra.mxu0 0
    %150 = vmatprep.subr.bf16.mxu0 0
    %151 = vmatpush2.bf16.msra.mxu0 0
    %152 = vmatprep.subr.bf16.mxu0 0
    %153 = vmatpush2.bf16.msra.mxu0 0
    %154 = vmatprep.mubr.bf16.mxu0 0
    %155 = vmatmul.mubr.bf16.gmra.mxu0 %v120
    %v156 = vpop.f32.mrf.mxu0
    %v157 = vadd.f32 %v105, %v156
    %v158 = vpop.f32.mrf.mxu0
    %v159 = vpop.f32.mrf.mxu0
    %v160 = vadd.f32 %v105, %v159
    %v161 = vpop.f32.mrf.mxu0
    %162 = vdwg.mxu0
    %v163 = vmax.f32 %v157, 0.0
    %v164 = vmax.f32 %v160, 0.0
    %v165 = vpack.c.bf16 %v164, %v163
    %v166 = vld [vmem:[#allocation7] sm:$0xf]
    %v167 = vld [vmem:[#allocation7 + $0x4] sm:$0xf]
    %v168 = vld [vmem:[#allocation7 + $0x8] sm:$0xf]
    %v169 = vld [vmem:[#allocation7 + $0xc] sm:$0xf]
    %v170 = vld [vmem:[#allocation7 + $0x10] sm:$0xf]
    %v171 = vld [vmem:[#allocation7 + $0x14] sm:$0xf]
    %v172 = vld [vmem:[#allocation7 + $0x18] sm:$0xf]
    %v173 = vld [vmem:[#allocation7 + $0x1c] sm:$0xf]
    %v174 = vld [vmem:[#allocation7 + $0x20] sm:$0xf]
    %v175 = vld [vmem:[#allocation7 + $0x24] sm:$0xf]
    %v176 = vld [vmem:[#allocation7 + $0x28] sm:$0xf]
    %v177 = vld [vmem:[#allocation7 + $0x2c] sm:$0xf]
    %v178 = vld [vmem:[#allocation7 + $0x30] sm:$0xf]
    %v179 = vld [vmem:[#allocation7 + $0x34] sm:$0xf]
    %v180 = vld [vmem:[#allocation7 + $0x38] sm:$0xf]
    %v181 = vld [vmem:[#allocation7 + $0x3c] sm:$0xf]
    %v182 = vld [vmem:[%s4] sm:$0x1]
    %v184 = vlaneseq
    %v185 = vshrl.u32 %v184, 7
    %v186 = vsub.s32 0, %v185
    %v187 = vrot.slane %v182, %v186
    %v205 = vunpack.c.l.b16 %v166
    %v206 = vunpack.c.l.b16 %v167
    %v207 = vunpack.c.l.b16 %v168
    %v208 = vunpack.c.l.b16 %v169
    %v209 = vunpack.c.l.b16 %v170
    %v210 = vunpack.c.l.b16 %v171
    %v211 = vunpack.c.l.b16 %v172
    %v212 = vunpack.c.l.b16 %v173
    %v213 = vunpack.c.l.b16 %v174
    %v214 = vunpack.c.l.b16 %v175
    %v215 = vunpack.c.l.b16 %v176
    %v216 = vunpack.c.l.b16 %v177
    %v217 = vunpack.c.l.b16 %v178
    %v218 = vunpack.c.l.b16 %v179
    %v219 = vunpack.c.l.b16 %v180
    %v220 = vunpack.c.l.b16 %v181
    %v221 = vpack.c.b16 %v206, %v205
    %v222 = vpack.c.b16 %v208, %v207
    %v223 = vpack.c.b16 %v210, %v209
    %v224 = vpack.c.b16 %v212, %v211
    %v225 = vpack.c.b16 %v214, %v213
    %v226 = vpack.c.b16 %v216, %v215
    %v227 = vpack.c.b16 %v218, %v217
    %v228 = vpack.c.b16 %v220, %v219
    %237 = vmatprep.subr.bf16.mxu0 0
    %238 = vmatpush1.bf16.msra.mxu0 %v228
    %239 = vmatprep.subr.bf16.mxu0 0
    %240 = vmatpush1.bf16.msra.mxu0 %v227
    %241 = vmatprep.subr.bf16.mxu0 0
    %242 = vmatpush1.bf16.msra.mxu0 %v226
    %243 = vmatprep.subr.bf16.mxu0 0
    %244 = vmatpush1.bf16.msra.mxu0 %v225
    %245 = vmatprep.subr.bf16.mxu0 0
    %246 = vmatpush1.bf16.msra.mxu0 %v224
    %247 = vmatprep.subr.bf16.mxu0 0
    %248 = vmatpush1.bf16.msra.mxu0 %v223
    %249 = vmatprep.subr.bf16.mxu0 0
    %250 = vmatpush1.bf16.msra.mxu0 %v222
    %251 = vmatprep.subr.bf16.mxu0 0
    %252 = vmatpush1.bf16.msra.mxu0 %v221
    %253 = vmatprep.subr.bf16.mxu0 0
    %254 = vmatpush2.bf16.msra.mxu0 0
    %255 = vmatprep.subr.bf16.mxu0 0
    %256 = vmatpush2.bf16.msra.mxu0 0
    %257 = vmatprep.subr.bf16.mxu0 0
    %258 = vmatpush2.bf16.msra.mxu0 0
    %259 = vmatprep.subr.bf16.mxu0 0
    %260 = vmatpush2.bf16.msra.mxu0 0
    %261 = vmatprep.subr.bf16.mxu0 0
    %262 = vmatpush2.bf16.msra.mxu0 0
    %263 = vmatprep.subr.bf16.mxu0 0
    %264 = vmatpush2.bf16.msra.mxu0 0
    %265 = vmatprep.subr.bf16.mxu0 0
    %266 = vmatpush2.bf16.msra.mxu0 0
    %267 = vmatprep.subr.bf16.mxu0 0
    %268 = vmatpush2.bf16.msra.mxu0 0
    %269 = vmatprep.mubr.bf16.mxu0 0
    %270 = vmatmul.mubr.bf16.gmra.mxu0 %v165
    %v271 = vpop.f32.mrf.mxu0
    %v272 = vadd.f32 %v187, %v271
    %v273 = vpop.f32.mrf.mxu0
    %v274 = vpop.f32.mrf.mxu0
    %v275 = vadd.f32 %v187, %v274
    %v276 = vpop.f32.mrf.mxu0
    %277 = vdwg.mxu0
    %v278 = vpack.c.bf16 %v275, %v272
    %v280 = vunpack.c.l.b16 %v278
    %v281 = vunpack.c.h.b16 %v278
    %v282 = vpack.c.b16 %v280, %v280
    %v283 = vpack.c.b16 %v281, %v281
    %286 = vst [vmem:[#allocation8] sm:$0xf] %v282
    %287 = vst [vmem:[#allocation8 + $0x4] sm:$0xf] %v283
    // Predicated region
    $region34: #{tpu_custom_call.1} parent=1 // pred_check
      _
    $region35: #{tpu_custom_call.1} parent=1 // pred_check_branch
      %289 = sbr.rel (0) target = $region37
    $region36: #{tpu_custom_call.1} parent=1 // pred_region
      %s291 = ssub.s32 128, 128
      %292 = vsyncadd [#allocation4], %s291
      %s293 = sshll.u32 [#allocation8], 4
      %s294 = int_to_ptr.vmem [resolvable:$true] %s293
      %299 = dma.vmem_to_hbm [thread:$0]  %s294, 128, %s5, [#allocation4], 64, 64, 4
    $region37: #{tpu_custom_call.1} parent=1 // pred_fallthru
      _
    // Predicated region
    $region38: #{tpu_custom_call.1} parent=1 // pred_check
      _
    $region39: #{tpu_custom_call.1} parent=1 // pred_check_branch
      %301 = sbr.rel (0) target = $region41
    $region40: #{tpu_custom_call.1} parent=1 // pred_region
      %302 = dma.done [#allocation4], 128
    $region41: #{tpu_custom_call.1} parent=1 // pred_fallthru
      _
    %303 = vsyncpa [#allocation3], 1
    %304 = vsyncpa [#allocation6], 1
    %305 = vsyncpa [#allocation4], 1

// kernel: tpu_custom_call.1
$region0: #{tpu_custom_call.1}
  #allocation0 [shape = 'u32[]', space=smem, size = 0x4, offset = 0x4, fixed_abs, tag = 'smem constant byte address 0x4 - core index']
  #allocation1 [shape = 'u32[144,128]{1,0:T(1,128)}', space=vmem, size = 0x12000, scoped, tag = 'internal scratch']
  %s0 = inlined_call_operand.hbm [shape: bf16[16,32], index: 0, kind: input, shape index: {}]
  %s1 = inlined_call_operand.hbm [shape: bf16[32,128], index: 1, kind: input, shape index: {}]
  %s2 = inlined_call_operand.vmem [shape: f32[1,128], index: 2, kind: input, shape index: {}]
  %s3 = inlined_call_operand.hbm [shape: bf16[128,128], index: 3, kind: input, shape index: {}]
  %s4 = inlined_call_operand.vmem [shape: f32[1,128], index: 4, kind: input, shape index: {}]
  %s5 = inlined_call_operand.hbm [shape: bf16[16,128], index: 5, kind: output, shape index: {}]
  %s6 = sld [smem:[#allocation0]]
  $region42: #{tpu_custom_call.1} parent=0
    _
  %s8 = ssub.s32 1, %s6
  %s9 = scalar_select 0, %s8, %s6
  $region1: #{tpu_custom_call.1} parent=0
    #allocation2 [shape = 'u8[4096]{0}', space=vmem, size = 0x1000, scoped, tag = 'input window, operand 0, single buffered']
    #allocation3 [shape = 's32[1]{0}', space=sflag, size = 0x4, scoped, tag = 'scoped memory for tpu_custom_call.1']
    #allocation4 [shape = 's32[1]{0}', space=sflag, size = 0x4, scoped, tag = 'scoped memory for tpu_custom_call.1']
    #allocation5 [shape = 'u8[8192]{0}', space=vmem, size = 0x2000, scoped, tag = 'input window, operand 1, single buffered']
    #allocation6 [shape = 's32[1]{0}', space=sflag, size = 0x4, scoped, tag = 'scoped memory for tpu_custom_call.1']
    #allocation7 [shape = 'u8[32768]{0}', space=vmem, size = 0x8000, scoped, tag = 'input window, operand 3, single buffered']
    #allocation8 [shape = 'u8[4096]{0}', space=vmem, size = 0x1000, scoped, tag = 'output window, operand 0, single buffered']
    %10 = vsyncpa [#allocation3], 0
    %11 = vsyncpa [#allocation6], 0
    %12 = vsyncpa [#allocation4], 0
    // Predicated region
    $region2: #{tpu_custom_call.1} parent=1 // pred_check
      _
    $region3: #{tpu_custom_call.1} parent=1 // pred_check_branch
      %14 = sbr.rel (0) target = $region5
    $region4: #{tpu_custom_call.1} parent=1 // pred_region
      %s16 = ssub.s32 128, 128
      %17 = vsyncadd [#allocation3], %s16
      %s18 = sshll.u32 [#allocation2], 4
      %s19 = int_to_ptr.vmem [resolvable:$true] %s18
      %24 = dma.hbm_to_vmem [thread:$0]  %s0, 128, %s19, [#allocation3], 64, 64, 4
    $region5: #{tpu_custom_call.1} parent=1 // pred_fallthru
      _
    // Predicated region
    $region6: #{tpu_custom_call.1} parent=1 // pred_check
      _
    $region7: #{tpu_custom_call.1} parent=1 // pred_check_branch
      %26 = sbr.rel (0) target = $region9
    $region8: #{tpu_custom_call.1} parent=1 // pred_region
      %s28 = ssub.s32 256, 256
      %29 = vsyncadd [#allocation6], %s28
      %s30 = sshll.u32 [#allocation5], 4
      %s31 = int_to_ptr.vmem [resolvable:$true] %s30
      %36 = dma.hbm_to_vmem [thread:$0]  %s1, 256, %s31, [#allocation6], 64, 64, 4
    $region9: #{tpu_custom_call.1} parent=1 // pred_fallthru
      _
    // Predicated region
    $region10: #{tpu_custom_call.1} parent=1 // pred_check
      _
    $region11: #{tpu_custom_call.1} parent=1 // pred_check_branch
      %38 = sbr.rel (0) target = $region13
    $region12: #{tpu_custom_call.1} parent=1 // pred_region
      _
    $region13: #{tpu_custom_call.1} parent=1 // pred_fallthru
      _
    // Predicated region
    $region14: #{tpu_custom_call.1} parent=1 // pred_check
      _
    $region15: #{tpu_custom_call.1} parent=1 // pred_check_branch
      %40 = sbr.rel (0) target = $region17
    $region16: #{tpu_custom_call.1} parent=1 // pred_region
      %s42 = ssub.s32 1024, 1024
      %43 = vsyncadd [#allocation6], %s42
      %s44 = sshll.u32 [#allocation7], 4
      %s45 = int_to_ptr.vmem [resolvable:$true] %s44
      %50 = dma.hbm_to_vmem [thread:$0]  %s3, 1024, %s45, [#allocation6], 64, 64, 4
    $region17: #{tpu_custom_call.1} parent=1 // pred_fallthru
      _
    // Predicated region
    $region18: #{tpu_custom_call.1} parent=1 // pred_check
      _
    $region19: #{tpu_custom_call.1} parent=1 // pred_check_branch
      %52 = sbr.rel (0) target = $region21
    $region20: #{tpu_custom_call.1} parent=1 // pred_region
      _
    $region21: #{tpu_custom_call.1} parent=1 // pred_fallthru
      _
    // Predicated region
    $region22: #{tpu_custom_call.1} parent=1 // pred_check
      _
    $region23: #{tpu_custom_call.1} parent=1 // pred_check_branch
      %54 = sbr.rel (0) target = $region25
    $region24: #{tpu_custom_call.1} parent=1 // pred_region
      %55 = dma.done [#allocation3], 128
    $region25: #{tpu_custom_call.1} parent=1 // pred_fallthru
      _
    // Predicated region
    $region26: #{tpu_custom_call.1} parent=1 // pred_check
      _
    $region27: #{tpu_custom_call.1} parent=1 // pred_check_branch
      %57 = sbr.rel (0) target = $region29
    $region28: #{tpu_custom_call.1} parent=1 // pred_region
      %58 = dma.done [#allocation6], 256
    $region29: #{tpu_custom_call.1} parent=1 // pred_fallthru
      _
    // Predicated region
    $region30: #{tpu_custom_call.1} parent=1 // pred_check
      _
    $region31: #{tpu_custom_call.1} parent=1 // pred_check_branch
      %60 = sbr.rel (0) target = $region33
    $region32: #{tpu_custom_call.1} parent=1 // pred_region
      %61 = dma.done [#allocation6], 1024
    $region33: #{tpu_custom_call.1} parent=1 // pred_fallthru
      _
    %v63 = vld [vmem:[#allocation2] sm:$0xf]
    %v64 = vld [vmem:[#allocation2 + $0x4] sm:$0xf]
    %v65 = vunpack.c.l.bf16 %v63
    %v66 = vunpack.c.l.bf16 %v64
    %vm67 = vcmask 261120
    %v68 = vsel %vm67, %v65, 0.0
    %69 = vadd.xlane.f32.xlu0 %v68
    %v70 = vpop.xlane.xlu0 %69
    %v71 = vsel %vm67, %v66, 0.0
    %72 = vadd.xlane.f32.xlu0 %v71
    %v73 = vpop.xlane.xlu0 %72
    %v74 = vrcp.pop 32.0
    %v75 = vmul.f32 %v70, %v74
    %v76 = vmul.f32 %v73, %v74
    %v77 = vsub.f32 %v65, %v75
    %v78 = vsub.f32 %v66, %v76
    %v79 = vmul.f32 %v77, %v77
    %v80 = vmul.f32 %v78, %v78
    %v81 = vsel %vm67, %v79, 0.0
    %82 = vadd.xlane.f32.xlu0 %v81
    %v83 = vpop.xlane.xlu0 %82
    %v84 = vsel %vm67, %v80, 0.0
    %85 = vadd.xlane.f32.xlu0 %v84
    %v86 = vpop.xlane.xlu0 %85
    %v87 = vmul.f32 %v83, %v74
    %v88 = vmul.f32 %v86, %v74
    %v89 = vadd.f32 %v87, 1e-12
    %v90 = vadd.f32 %v88, 1e-12
    %v91 = vrsqrt.pop %v89
    %v92 = vrsqrt.pop %v90
    %v93 = vmul.f32 %v77, %v91
    %v94 = vmul.f32 %v78, %v92
    %v95 = vpack.c.bf16 %v94, %v93
    %v96 = vld [vmem:[#allocation5] sm:$0xf]
    %v97 = vld [vmem:[#allocation5 + $0x4] sm:$0xf]
    %v98 = vld [vmem:[#allocation5 + $0x8] sm:$0xf]
    %v99 = vld [vmem:[#allocation5 + $0xc] sm:$0xf]
    %v100 = vld [vmem:[%s2] sm:$0x1]
    %v102 = vlaneseq
    %v103 = vshrl.u32 %v102, 7
    %v104 = vsub.s32 0, %v103
    %v105 = vrot.slane %v100, %v104
    %v111 = vunpack.c.l.b16 %v96
    %v112 = vunpack.c.l.b16 %v97
    %v113 = vunpack.c.l.b16 %v98
    %v114 = vunpack.c.l.b16 %v99
    %v115 = vpack.c.b16 %v112, %v111
    %v116 = vpack.c.b16 %v114, %v113
    %v120 = vsel %vm67, %v95, 0
    %122 = vmatprep.subr.bf16.mxu0 0
    %123 = vmatpush1.bf16.msra.mxu0 0
    %124 = vmatprep.subr.bf16.mxu0 0
    %125 = vmatpush1.bf16.msra.mxu0 0
    %126 = vmatprep.subr.bf16.mxu0 0
    %127 = vmatpush1.bf16.msra.mxu0 0
    %128 = vmatprep.subr.bf16.mxu0 0
    %129 = vmatpush1.bf16.msra.mxu0 0
    %130 = vmatprep.subr.bf16.mxu0 0
    %131 = vmatpush1.bf16.msra.mxu0 0
    %132 = vmatprep.subr.bf16.mxu0 0
    %133 = vmatpush1.bf16.msra.mxu0 0
    %134 = vmatprep.subr.bf16.mxu0 0
    %135 = vmatpush1.bf16.msra.mxu0 %v116
    %136 = vmatprep.subr.bf16.mxu0 0
    %137 = vmatpush1.bf16.msra.mxu0 %v115
    %138 = vmatprep.subr.bf16.mxu0 0
    %139 = vmatpush2.bf16.msra.mxu0 0
    %140 = vmatprep.subr.bf16.mxu0 0
    %141 = vmatpush2.bf16.msra.mxu0 0
    %142 = vmatprep.subr.bf16.mxu0 0
    %143 = vmatpush2.bf16.msra.mxu0 0
    %144 = vmatprep.subr.bf16.mxu0 0
    %145 = vmatpush2.bf16.msra.mxu0 0
    %146 = vmatprep.subr.bf16.mxu0 0
    %147 = vmatpush2.bf16.msra.mxu0 0
    %148 = vmatprep.subr.bf16.mxu0 0
    %149 = vmatpush2.bf16.msra.mxu0 0
    %150 = vmatprep.subr.bf16.mxu0 0
    %151 = vmatpush2.bf16.msra.mxu0 0
    %152 = vmatprep.subr.bf16.mxu0 0
    %153 = vmatpush2.bf16.msra.mxu0 0
    %154 = vmatprep.mubr.bf16.mxu0 0
    %155 = vmatmul.mubr.bf16.gmra.mxu0 %v120
    %v156 = vpop.f32.mrf.mxu0
    %v157 = vadd.f32 %v105, %v156
    %v158 = vpop.f32.mrf.mxu0
    %v159 = vpop.f32.mrf.mxu0
    %v160 = vadd.f32 %v105, %v159
    %v161 = vpop.f32.mrf.mxu0
    %162 = vdwg.mxu0
    %v163 = vmax.f32 %v157, 0.0
    %v164 = vmax.f32 %v160, 0.0
    %v165 = vpack.c.bf16 %v164, %v163
    %v166 = vld [vmem:[#allocation7] sm:$0xf]
    %v167 = vld [vmem:[#allocation7 + $0x4] sm:$0xf]
    %v168 = vld [vmem:[#allocation7 + $0x8] sm:$0xf]
    %v169 = vld [vmem:[#allocation7 + $0xc] sm:$0xf]
    %v170 = vld [vmem:[#allocation7 + $0x10] sm:$0xf]
    %v171 = vld [vmem:[#allocation7 + $0x14] sm:$0xf]
    %v172 = vld [vmem:[#allocation7 + $0x18] sm:$0xf]
    %v173 = vld [vmem:[#allocation7 + $0x1c] sm:$0xf]
    %v174 = vld [vmem:[#allocation7 + $0x20] sm:$0xf]
    %v175 = vld [vmem:[#allocation7 + $0x24] sm:$0xf]
    %v176 = vld [vmem:[#allocation7 + $0x28] sm:$0xf]
    %v177 = vld [vmem:[#allocation7 + $0x2c] sm:$0xf]
    %v178 = vld [vmem:[#allocation7 + $0x30] sm:$0xf]
    %v179 = vld [vmem:[#allocation7 + $0x34] sm:$0xf]
    %v180 = vld [vmem:[#allocation7 + $0x38] sm:$0xf]
    %v181 = vld [vmem:[#allocation7 + $0x3c] sm:$0xf]
    %v182 = vld [vmem:[%s4] sm:$0x1]
    %v184 = vlaneseq
    %v185 = vshrl.u32 %v184, 7
    %v186 = vsub.s32 0, %v185
    %v187 = vrot.slane %v182, %v186
    %v205 = vunpack.c.l.b16 %v166
    %v206 = vunpack.c.l.b16 %v167
    %v207 = vunpack.c.l.b16 %v168
    %v208 = vunpack.c.l.b16 %v169
    %v209 = vunpack.c.l.b16 %v170
    %v210 = vunpack.c.l.b16 %v171
    %v211 = vunpack.c.l.b16 %v172
    %v212 = vunpack.c.l.b16 %v173
    %v213 = vunpack.c.l.b16 %v174
    %v214 = vunpack.c.l.b16 %v175
    %v215 = vunpack.c.l.b16 %v176
    %v216 = vunpack.c.l.b16 %v177
    %v217 = vunpack.c.l.b16 %v178
    %v218 = vunpack.c.l.b16 %v179
    %v219 = vunpack.c.l.b16 %v180
    %v220 = vunpack.c.l.b16 %v181
    %v221 = vpack.c.b16 %v206, %v205
    %v222 = vpack.c.b16 %v208, %v207
    %v223 = vpack.c.b16 %v210, %v209
    %v224 = vpack.c.b16 %v212, %v211
    %v225 = vpack.c.b16 %v214, %v213
    %v226 = vpack.c.b16 %v216, %v215
    %v227 = vpack.c.b16 %v218, %v217
    %v228 = vpack.c.b16 %v220, %v219
    %237 = vmatprep.subr.bf16.mxu0 0
    %238 = vmatpush1.bf16.msra.mxu0 %v228
    %239 = vmatprep.subr.bf16.mxu0 0
    %240 = vmatpush1.bf16.msra.mxu0 %v227
    %241 = vmatprep.subr.bf16.mxu0 0
    %242 = vmatpush1.bf16.msra.mxu0 %v226
    %243 = vmatprep.subr.bf16.mxu0 0
    %244 = vmatpush1.bf16.msra.mxu0 %v225
    %245 = vmatprep.subr.bf16.mxu0 0
    %246 = vmatpush1.bf16.msra.mxu0 %v224
    %247 = vmatprep.subr.bf16.mxu0 0
    %248 = vmatpush1.bf16.msra.mxu0 %v223
    %249 = vmatprep.subr.bf16.mxu0 0
    %250 = vmatpush1.bf16.msra.mxu0 %v222
    %251 = vmatprep.subr.bf16.mxu0 0
    %252 = vmatpush1.bf16.msra.mxu0 %v221
    %253 = vmatprep.subr.bf16.mxu0 0
    %254 = vmatpush2.bf16.msra.mxu0 0
    %255 = vmatprep.subr.bf16.mxu0 0
    %256 = vmatpush2.bf16.msra.mxu0 0
    %257 = vmatprep.subr.bf16.mxu0 0
    %258 = vmatpush2.bf16.msra.mxu0 0
    %259 = vmatprep.subr.bf16.mxu0 0
    %260 = vmatpush2.bf16.msra.mxu0 0
    %261 = vmatprep.subr.bf16.mxu0 0
    %262 = vmatpush2.bf16.msra.mxu0 0
    %263 = vmatprep.subr.bf16.mxu0 0
    %264 = vmatpush2.bf16.msra.mxu0 0
    %265 = vmatprep.subr.bf16.mxu0 0
    %266 = vmatpush2.bf16.msra.mxu0 0
    %267 = vmatprep.subr.bf16.mxu0 0
    %268 = vmatpush2.bf16.msra.mxu0 0
    %269 = vmatprep.mubr.bf16.mxu0 0
    %270 = vmatmul.mubr.bf16.gmra.mxu0 %v165
    %v271 = vpop.f32.mrf.mxu0
    %v272 = vadd.f32 %v187, %v271
    %v273 = vpop.f32.mrf.mxu0
    %v274 = vpop.f32.mrf.mxu0
    %v275 = vadd.f32 %v187, %v274
    %v276 = vpop.f32.mrf.mxu0
    %277 = vdwg.mxu0
    %v278 = vpack.c.bf16 %v275, %v272
    %v280 = vunpack.c.l.b16 %v278
    %v281 = vunpack.c.h.b16 %v278
    %v282 = vpack.c.b16 %v280, %v280
    %v283 = vpack.c.b16 %v281, %v281
    %286 = vst [vmem:[#allocation8] sm:$0xf] %v282
    %287 = vst [vmem:[#allocation8 + $0x4] sm:$0xf] %v283
    // Predicated region
    $region34: #{tpu_custom_call.1} parent=1 // pred_check
      _
    $region35: #{tpu_custom_call.1} parent=1 // pred_check_branch
      %289 = sbr.rel (0) target = $region37
    $region36: #{tpu_custom_call.1} parent=1 // pred_region
      %s291 = ssub.s32 128, 128
      %292 = vsyncadd [#allocation4], %s291
      %s293 = sshll.u32 [#allocation8], 4
      %s294 = int_to_ptr.vmem [resolvable:$true] %s293
      %299 = dma.vmem_to_hbm [thread:$0]  %s294, 128, %s5, [#allocation4], 64, 64, 4
    $region37: #{tpu_custom_call.1} parent=1 // pred_fallthru
      _
    // Predicated region
    $region38: #{tpu_custom_call.1} parent=1 // pred_check
      _
    $region39: #{tpu_custom_call.1} parent=1 // pred_check_branch
      %301 = sbr.rel (0) target = $region41
    $region40: #{tpu_custom_call.1} parent=1 // pred_region
      %302 = dma.done [#allocation4], 128
    $region41: #{tpu_custom_call.1} parent=1 // pred_fallthru
      _
    %303 = vsyncpa [#allocation3], 1
    %304 = vsyncpa [#allocation6], 1
    %305 = vsyncpa [#allocation4], 1

</llo_original>
